<compile_context>
chip_gen: v7x
topology: tpu7x:2x2x1
jax: 0.10.0
libtpu: 0.0.40
codegen_flags: <defaults>
</compile_context>

<pallas_src>
import numpy as np
import jax
import jax.numpy as jnp
from jax.experimental import pallas as pl
from jax.experimental.pallas import tpu as pltpu  # noqa: F401  (kept for parity / future scratch use)

# ----- module hyper-parameters (small, deterministic) -----
Q_DIM = 8      # q_dim  (Linear in-features)
H_DIM = 32     # h_dim  (Linear out-features)
N_NODES = 16   # number of particles / nodes


# ---------------- fused PotentialEnergy kernel ----------------
def potential_energy_kernel(q_ref, mcol_ref, mrow_ref, nnm_ref, w_ref, b_ref, p_ref):
    q = q_ref[...]                                                    # [N, Q]

    # Hoisted projection: root[i, j, :] = (q[j] - q[i]) @ W^T + b = (qW[j] + b) - qW[i]
    qw = jnp.dot(q, w_ref[...], preferred_element_type=jnp.float32)   # [N, H]
    a = qw + b_ref[...]                                               # [N, H]
    diff = a[None, :, :] - qw[:, None, :]                             # [N, N, H]
    sq = jnp.sum(diff * diff, axis=2)                                 # [N, N]

    # softplus(sq) = log(1 + exp(sq)); sq >= 0 so exp(-sq) <= 1 -> numerically safe
    sp = sq + jnp.log(1.0 + jnp.exp(-sq))

    # distance = softplus(.) * (1 - I) + I  (diagonal forced to 1)
    n = sq.shape[0]
    row = jax.lax.broadcasted_iota(jnp.int32, (n, n), 0)
    col = jax.lax.broadcasted_iota(jnp.int32, (n, n), 1)
    distance = jnp.where(row == col, 1.0, sp)

    # mask = nnm * (m m^T)   (m passed pre-shaped as column and row to avoid an
    # in-kernel sublane<->lane relayout)
    mask = nnm_ref[...] * (mcol_ref[...] * mrow_ref[...])

    d_inv = 1.0 / distance
    energy = mask * (d_inv * d_inv - d_inv)
    # NaN scrub (equivalent to the torch `if isnan(sum): energy[isnan]=0` branch)
    energy = jnp.where(energy != energy, 0.0, energy)

    p_ref[...] = jnp.sum(energy, axis=1, keepdims=True)               # [N, 1]


@jax.jit
def potential_energy(m, q, nnm, w_t, b):
    n = q.shape[0]
    m_col = jnp.reshape(m, (n, 1)).astype(jnp.float32)
    m_row = jnp.reshape(m, (1, n)).astype(jnp.float32)
    return pl.pallas_call(
        potential_energy_kernel,
        out_shape=jax.ShapeDtypeStruct((n, 1), jnp.float32),
    )(q.astype(jnp.float32), m_col, m_row, nnm.astype(jnp.float32), w_t, b)


# ---------------- pure-JAX reference (mirrors the PyTorch forward) ----------------
def reference(m, q, nnm, w_t, b):
    n = q.shape[0]
    mm = m.reshape(n, 1) * m.reshape(1, n)
    eye = jnp.eye(n, dtype=jnp.float32)
    mask = nnm * mm
    delta_p = q[None, :, :] - q[:, None, :]           # [N, N, Q]
    root = delta_p @ w_t + b                          # [N, N, H]
    distance = jax.nn.softplus(jnp.sum(root ** 2, axis=2)) * (1.0 - eye) + eye
    energy = mask * (distance ** (-2) - distance ** (-1))
    energy = jnp.where(jnp.isnan(energy), 0.0, energy)
    return jnp.sum(energy, axis=1, keepdims=True)


if __name__ == "__main__":
    key = jax.random.PRNGKey(0)
    k_q, k_m, k_nnm, k_w, k_b = jax.random.split(key, 5)

    # deterministic small inputs
    q = jax.random.normal(k_q, (N_NODES, Q_DIM), jnp.float32)                 # positions
    m = jax.random.uniform(k_m, (N_NODES, 1), jnp.float32, 0.5, 2.0)          # masses
    nnm_raw = jnp.asarray(jax.random.bernoulli(k_nnm, 0.5, (N_NODES, N_NODES)),
                          jnp.float32)
    nnm = jnp.maximum(nnm_raw, nnm_raw.T) * (1.0 - jnp.eye(N_NODES, dtype=jnp.float32))

    # Linear(q_dim, h_dim) parameters, PyTorch-style init; pass W transposed
    bound = 1.0 / np.sqrt(Q_DIM)
    w = jax.random.uniform(k_w, (H_DIM, Q_DIM), jnp.float32, -bound, bound)
    b = jax.random.uniform(k_b, (1, H_DIM), jnp.float32, -bound, bound)
    w_t = jnp.asarray(w).T                                                    # [Q, H]

    p_out = potential_energy(m, q, nnm, w_t, b)
    jax.block_until_ready(p_out)

    p_ref = reference(m, q, nnm, w_t, b)
    np.testing.assert_allclose(np.asarray(p_out), np.asarray(p_ref),
                               rtol=1e-4, atol=1e-4)
    assert p_out.shape == (N_NODES, 1)

    print("KERNEL_OK")
</pallas_src>

<mosaic_0001>
module attributes {stable_mosaic.version = 11 : i64} {
  func.func @potential_energy_kernel(%arg0: memref<16x8xf32, #tpu.memory_space<vmem>>, %arg1: memref<16x1xf32, #tpu.memory_space<vmem>>, %arg2: memref<1x16xf32, #tpu.memory_space<vmem>>, %arg3: memref<16x16xf32, #tpu.memory_space<vmem>>, %arg4: memref<8x32xf32, #tpu.memory_space<vmem>>, %arg5: memref<1x32xf32, #tpu.memory_space<vmem>>, %arg6: memref<16x1xf32, #tpu.memory_space<vmem>>) attributes {dimension_semantics = [], scalar_prefetch = 0 : i64, scratch_operands = 0 : i64, tpu.core_type = #tpu.core_type<tc>} {
    %c0 = arith.constant 0 : index
    %c0_0 = arith.constant 0 : index
    %0 = vector.load %arg0[%c0, %c0_0] : memref<16x8xf32, #tpu.memory_space<vmem>>, vector<16x8xf32>
    %c0_1 = arith.constant 0 : index
    %c0_2 = arith.constant 0 : index
    %1 = vector.load %arg4[%c0_1, %c0_2] : memref<8x32xf32, #tpu.memory_space<vmem>>, vector<8x32xf32>
    %cst = arith.constant dense<0.000000e+00> : vector<16x32xf32>
    %2 = tpu.matmul %0, %1, %cst {dimension_numbers = #tpu.dot_dimension_numbers<[1], [0], [0], [1], [0, 0, 1, 1], [], []>} : vector<16x8xf32>, vector<8x32xf32>, vector<16x32xf32> -> vector<16x32xf32>
    %c0_3 = arith.constant 0 : index
    %c0_4 = arith.constant 0 : index
    %3 = vector.load %arg5[%c0_3, %c0_4] : memref<1x32xf32, #tpu.memory_space<vmem>>, vector<1x32xf32>
    %4 = vector.broadcast %3 : vector<1x32xf32> to vector<16x32xf32>
    %5 = arith.addf %2, %4 : vector<16x32xf32>
    %6 = vector.shape_cast %5 : vector<16x32xf32> to vector<1x16x32xf32>
    %7 = vector.shape_cast %2 : vector<16x32xf32> to vector<16x1x32xf32>
    %8 = vector.broadcast %6 : vector<1x16x32xf32> to vector<16x16x32xf32>
    %9 = vector.broadcast %7 : vector<16x1x32xf32> to vector<16x16x32xf32>
    %10 = arith.subf %8, %9 : vector<16x16x32xf32>
    %11 = arith.mulf %10, %10 : vector<16x16x32xf32>
    %cst_5 = arith.constant dense<0.000000e+00> : vector<16x16xf32>
    %12 = vector.multi_reduction <add>, %11, %cst_5 [2] : vector<16x16x32xf32> to vector<16x16xf32>
    %cst_6 = arith.constant 0.000000e+00 : f32
    %13 = vector.broadcast %cst_6 : f32 to vector<16x16xf32>
    %14 = arith.subf %13, %12 : vector<16x16xf32>
    %15 = math.exp %14 : vector<16x16xf32>
    %cst_7 = arith.constant 1.000000e+00 : f32
    %16 = vector.broadcast %cst_7 : f32 to vector<16x16xf32>
    %17 = arith.addf %16, %15 : vector<16x16xf32>
    %18 = math.log %17 : vector<16x16xf32>
    %19 = arith.addf %12, %18 : vector<16x16xf32>
    %20 = tpu.iota {dimensions = array<i32: 0>} : vector<16x16xi32>
    %21 = tpu.iota {dimensions = array<i32: 1>} : vector<16x16xi32>
    %22 = arith.cmpi eq, %20, %21 : vector<16x16xi32>
    %cst_8 = arith.constant 1.000000e+00 : f32
    %23 = vector.broadcast %cst_8 : f32 to vector<16x16xf32>
    %24 = arith.select %22, %23, %19 : vector<16x16xi1>, vector<16x16xf32>
    %c0_9 = arith.constant 0 : index
    %c0_10 = arith.constant 0 : index
    %25 = vector.load %arg3[%c0_9, %c0_10] : memref<16x16xf32, #tpu.memory_space<vmem>>, vector<16x16xf32>
    %c0_11 = arith.constant 0 : index
    %c0_12 = arith.constant 0 : index
    %26 = vector.load %arg1[%c0_11, %c0_12] : memref<16x1xf32, #tpu.memory_space<vmem>>, vector<16x1xf32>
    %c0_13 = arith.constant 0 : index
    %c0_14 = arith.constant 0 : index
    %27 = vector.load %arg2[%c0_13, %c0_14] : memref<1x16xf32, #tpu.memory_space<vmem>>, vector<1x16xf32>
    %28 = vector.broadcast %26 : vector<16x1xf32> to vector<16x16xf32>
    %29 = vector.broadcast %27 : vector<1x16xf32> to vector<16x16xf32>
    %30 = arith.mulf %28, %29 : vector<16x16xf32>
    %31 = arith.mulf %25, %30 : vector<16x16xf32>
    %cst_15 = arith.constant 1.000000e+00 : f32
    %32 = vector.broadcast %cst_15 : f32 to vector<16x16xf32>
    %33 = arith.divf %32, %24 : vector<16x16xf32>
    %34 = arith.mulf %33, %33 : vector<16x16xf32>
    %35 = arith.subf %34, %33 : vector<16x16xf32>
    %36 = arith.mulf %31, %35 : vector<16x16xf32>
    %37 = arith.cmpf one, %36, %36 : vector<16x16xf32>
    %cst_16 = arith.constant 0.000000e+00 : f32
    %38 = vector.broadcast %cst_16 : f32 to vector<16x16xf32>
    %39 = arith.select %37, %38, %36 : vector<16x16xi1>, vector<16x16xf32>
    %cst_17 = arith.constant dense<0.000000e+00> : vector<16xf32>
    %40 = vector.multi_reduction <add>, %39, %cst_17 [1] : vector<16x16xf32> to vector<16xf32>
    %41 = vector.shape_cast %40 : vector<16xf32> to vector<16x1xf32>
    %c0_18 = arith.constant 0 : index
    %c0_19 = arith.constant 0 : index
    %42 = vector.load %arg6[%c0_18, %c0_19] : memref<16x1xf32, #tpu.memory_space<vmem>>, vector<16x1xf32>
    tpu.vector_store %arg6[%c0_18, %c0_19], %41 {strides = array<i32>} : memref<16x1xf32, #tpu.memory_space<vmem>>, vector<16x1xf32>,
    return
  }
}

</mosaic_0001>

<llo_original>
// kernel: potential_energy.1
$region0: #{potential_energy.1}
  #allocation0 [shape = 'u32[]', space=smem, size = 0x4, offset = 0x4, fixed_abs, tag = 'smem constant byte address 0x4 - core index']
  #allocation1 [shape = 'u32[144,128]{1,0:T(1,128)}', space=vmem, size = 0x12000, scoped, tag = 'internal scratch']
  %s0 = inlined_call_operand.vmem [shape: f32[16,8], index: 0, kind: input, shape index: {}]
  %s1 = inlined_call_operand.vmem [shape: f32[16,1], index: 1, kind: input, shape index: {}]
  %s2 = inlined_call_operand.vmem [shape: f32[1,16], index: 2, kind: input, shape index: {}]
  %s3 = inlined_call_operand.vmem [shape: f32[16,16], index: 3, kind: input, shape index: {}]
  %s4 = inlined_call_operand.vmem [shape: f32[8,32], index: 4, kind: input, shape index: {}]
  %s5 = inlined_call_operand.vmem [shape: f32[1,32], index: 5, kind: input, shape index: {}]
  %s6 = inlined_call_operand.vmem [shape: f32[16,1], index: 6, kind: output, shape index: {}]
  %s7 = sld [smem:[#allocation0]]
  $region34: #{potential_energy.1} parent=0
    _
  %s9 = ssub.s32 1, %s7
  %s10 = scalar_select 0, %s9, %s7
  // Predicated region
  $region2: #{potential_energy.1} parent=0 // pred_check
    _
  $region3: #{potential_energy.1} parent=0 // pred_check_branch
    %12 = sbr.rel (0) target = $region5
  $region4: #{potential_energy.1} parent=0 // pred_region
    _
  $region5: #{potential_energy.1} parent=0 // pred_fallthru
    _
  // Predicated region
  $region6: #{potential_energy.1} parent=0 // pred_check
    _
  $region7: #{potential_energy.1} parent=0 // pred_check_branch
    %14 = sbr.rel (0) target = $region9
  $region8: #{potential_energy.1} parent=0 // pred_region
    _
  $region9: #{potential_energy.1} parent=0 // pred_fallthru
    _
  // Predicated region
  $region10: #{potential_energy.1} parent=0 // pred_check
    _
  $region11: #{potential_energy.1} parent=0 // pred_check_branch
    %16 = sbr.rel (0) target = $region13
  $region12: #{potential_energy.1} parent=0 // pred_region
    _
  $region13: #{potential_energy.1} parent=0 // pred_fallthru
    _
  // Predicated region
  $region14: #{potential_energy.1} parent=0 // pred_check
    _
  $region15: #{potential_energy.1} parent=0 // pred_check_branch
    %18 = sbr.rel (0) target = $region17
  $region16: #{potential_energy.1} parent=0 // pred_region
    _
  $region17: #{potential_energy.1} parent=0 // pred_fallthru
    _
  // Predicated region
  $region18: #{potential_energy.1} parent=0 // pred_check
    _
  $region19: #{potential_energy.1} parent=0 // pred_check_branch
    %20 = sbr.rel (0) target = $region21
  $region20: #{potential_energy.1} parent=0 // pred_region
    _
  $region21: #{potential_energy.1} parent=0 // pred_fallthru
    _
  // Predicated region
  $region22: #{potential_energy.1} parent=0 // pred_check
    _
  $region23: #{potential_energy.1} parent=0 // pred_check_branch
    %22 = sbr.rel (0) target = $region25
  $region24: #{potential_energy.1} parent=0 // pred_region
    _
  $region25: #{potential_energy.1} parent=0 // pred_fallthru
    _
  %v23 = vld [vmem:[%s0] sm:$0xff]
  %v24 = vld [vmem:[%s0 + $0x8] sm:$0xff]
  %v25 = vld [vmem:[%s4] sm:$0xff]
  %vm26 = vcmask 64512
  %v28 = vsel %vm26, %v23, 0
  %v31 = vsel %vm26, %v24, 0
  %33 = vmatprep.subr.mxu0 0.0
  %34 = vmatpush1.msra.mxu0 %v25
  %35 = vmatprep.subr.mxu0 0.0
  %36 = vmatpush1.msra.mxu0 0.0
  %37 = vmatprep.subr.mxu0 0.0
  %38 = vmatpush1.msra.mxu0 0.0
  %39 = vmatprep.subr.mxu0 0.0
  %40 = vmatpush1.msra.mxu0 0.0
  %41 = vmatprep.subr.mxu0 0.0
  %42 = vmatpush1.msra.mxu0 0.0
  %43 = vmatprep.subr.mxu0 0.0
  %44 = vmatpush1.msra.mxu0 0.0
  %45 = vmatprep.subr.mxu0 0.0
  %46 = vmatpush1.msra.mxu0 0.0
  %47 = vmatprep.subr.mxu0 0.0
  %48 = vmatpush1.msra.mxu0 0.0
  %49 = vmatprep.subr.mxu0 0.0
  %50 = vmatpush1.msra.mxu0 0.0
  %51 = vmatprep.subr.mxu0 0.0
  %52 = vmatpush1.msra.mxu0 0.0
  %53 = vmatprep.subr.mxu0 0.0
  %54 = vmatpush1.msra.mxu0 0.0
  %55 = vmatprep.subr.mxu0 0.0
  %56 = vmatpush1.msra.mxu0 0.0
  %57 = vmatprep.subr.mxu0 0.0
  %58 = vmatpush1.msra.mxu0 0.0
  %59 = vmatprep.subr.mxu0 0.0
  %60 = vmatpush1.msra.mxu0 0.0
  %61 = vmatprep.subr.mxu0 0.0
  %62 = vmatpush1.msra.mxu0 0.0
  %63 = vmatprep.subr.mxu0 0.0
  %64 = vmatpush1.msra.mxu0 0.0
  %65 = vmatprep.subr.mxu0 0.0
  %66 = vmatpush1.msra.mxu0 0.0
  %67 = vmatprep.subr.mxu0 0.0
  %68 = vmatpush1.msra.mxu0 0.0
  %69 = vmatprep.subr.mxu0 0.0
  %70 = vmatpush1.msra.mxu0 0.0
  %71 = vmatprep.subr.mxu0 0.0
  %72 = vmatpush1.msra.mxu0 0.0
  %73 = vmatprep.subr.mxu0 0.0
  %74 = vmatpush1.msra.mxu0 0.0
  %75 = vmatprep.subr.mxu0 0.0
  %76 = vmatpush1.msra.mxu0 0.0
  %77 = vmatprep.subr.mxu0 0.0
  %78 = vmatpush1.msra.mxu0 0.0
  %79 = vmatprep.subr.mxu0 0.0
  %80 = vmatpush1.msra.mxu0 0.0
  %81 = vmatprep.subr.mxu0 0.0
  %82 = vmatpush1.msra.mxu0 0.0
  %83 = vmatprep.subr.mxu0 0.0
  %84 = vmatpush1.msra.mxu0 0.0
  %85 = vmatprep.subr.mxu0 0.0
  %86 = vmatpush1.msra.mxu0 0.0
  %87 = vmatprep.subr.mxu0 0.0
  %88 = vmatpush1.msra.mxu0 0.0
  %89 = vmatprep.subr.mxu0 0.0
  %90 = vmatpush1.msra.mxu0 0.0
  %91 = vmatprep.subr.mxu0 0.0
  %92 = vmatpush1.msra.mxu0 0.0
  %93 = vmatprep.subr.mxu0 0.0
  %94 = vmatpush1.msra.mxu0 0.0
  %95 = vmatprep.subr.mxu0 0.0
  %96 = vmatpush1.msra.mxu0 0.0
  %97 = vmatprep.mubr.f32.mxu0 0.0
  %98 = vmatmul.mubr.f32.gmra.mrb[0].mxu0 %v28
  %v99 = vpop.f32.mrb[0].mxu0
  %v100 = vadd.f32 0.0, %v99
  %v101 = vpop.f32.mrb[0].mxu0
  %102 = vmatprep.mubr.f32.mxu0 0.0
  %103 = vmatmul.mubr.f32.gmra.mrb[0].mxu0 %v31
  %v104 = vpop.f32.mrb[0].mxu0
  %v105 = vadd.f32 0.0, %v104
  %v106 = vpop.f32.mrb[0].mxu0
  %107 = vdwg.mxu0
  %v108 = vld [vmem:[%s5] sm:$0x1]
  %v110 = vlaneseq
  %v111 = vshrl.u32 %v110, 7
  %v112 = vsub.s32 0, %v111
  %v113 = vrot.slane %v108, %v112
  %v115 = vadd.f32 %v100, %v113
  %v116 = vadd.f32 %v105, %v113
  %v119 = vcombine.high %v100, %v100
  %v121 = vunpack.c.l.s4 1966171168
  %v122 = vunpack.c.0.s8 %v121
  %v123 = vlaneseq
  %v124 = vshrl.u32 %v123, 7
  %v125 = vsub.s32 %v122, %v124
  %v126 = vrot.slane %v100, %v125
  %v128 = vunpack.c.l.s4 1966171168
  %v129 = vunpack.c.0.s8 %v128
  %v130 = vlaneseq
  %v131 = vshrl.u32 %v130, 7
  %v132 = vsub.s32 %v129, %v131
  %v133 = vrot.slane %v119, %v132
  %v134 = vcombine.high %v126, %v126
  %v135 = vcombine.high %v133, %v133
  %v137 = vunpack.c.l.s4 1966171168
  %v138 = vunpack.c.0.s8 %v137
  %v139 = vlaneseq
  %v140 = vshrl.u32 %v139, 7
  %v141 = vsub.s32 %v138, %v140
  %v142 = vrot.slane %v126, %v141
  %v144 = vunpack.c.l.s4 1966171168
  %v145 = vunpack.c.0.s8 %v144
  %v146 = vlaneseq
  %v147 = vshrl.u32 %v146, 7
  %v148 = vsub.s32 %v145, %v147
  %v149 = vrot.slane %v133, %v148
  %v151 = vunpack.c.l.s4 1966171168
  %v152 = vunpack.c.0.s8 %v151
  %v153 = vlaneseq
  %v154 = vshrl.u32 %v153, 7
  %v155 = vsub.s32 %v152, %v154
  %v156 = vrot.slane %v134, %v155
  %v158 = vunpack.c.l.s4 1966171168
  %v159 = vunpack.c.0.s8 %v158
  %v160 = vlaneseq
  %v161 = vshrl.u32 %v160, 7
  %v162 = vsub.s32 %v159, %v161
  %v163 = vrot.slane %v135, %v162
  %v164 = vcombine.high %v142, %v142
  %v165 = vcombine.high %v149, %v149
  %v166 = vcombine.high %v156, %v156
  %v167 = vcombine.high %v163, %v163
  %v168 = vcombine.high %v105, %v105
  %v170 = vunpack.c.l.s4 1966171168
  %v171 = vunpack.c.0.s8 %v170
  %v172 = vlaneseq
  %v173 = vshrl.u32 %v172, 7
  %v174 = vsub.s32 %v171, %v173
  %v175 = vrot.slane %v105, %v174
  %v177 = vunpack.c.l.s4 1966171168
  %v178 = vunpack.c.0.s8 %v177
  %v179 = vlaneseq
  %v180 = vshrl.u32 %v179, 7
  %v181 = vsub.s32 %v178, %v180
  %v182 = vrot.slane %v168, %v181
  %v183 = vcombine.high %v175, %v175
  %v184 = vcombine.high %v182, %v182
  %v186 = vunpack.c.l.s4 1966171168
  %v187 = vunpack.c.0.s8 %v186
  %v188 = vlaneseq
  %v189 = vshrl.u32 %v188, 7
  %v190 = vsub.s32 %v187, %v189
  %v191 = vrot.slane %v175, %v190
  %v193 = vunpack.c.l.s4 1966171168
  %v194 = vunpack.c.0.s8 %v193
  %v195 = vlaneseq
  %v196 = vshrl.u32 %v195, 7
  %v197 = vsub.s32 %v194, %v196
  %v198 = vrot.slane %v182, %v197
  %v200 = vunpack.c.l.s4 1966171168
  %v201 = vunpack.c.0.s8 %v200
  %v202 = vlaneseq
  %v203 = vshrl.u32 %v202, 7
  %v204 = vsub.s32 %v201, %v203
  %v205 = vrot.slane %v183, %v204
  %v207 = vunpack.c.l.s4 1966171168
  %v208 = vunpack.c.0.s8 %v207
  %v209 = vlaneseq
  %v210 = vshrl.u32 %v209, 7
  %v211 = vsub.s32 %v208, %v210
  %v212 = vrot.slane %v184, %v211
  %v213 = vcombine.high %v191, %v191
  %v214 = vcombine.high %v198, %v198
  %v215 = vcombine.high %v205, %v205
  %v216 = vcombine.high %v212, %v212
  %v217 = vlaneseq
  %v218 = vshrl.u32 %v217, 7
  %v219 = vsub.s32 0, %v218
  %v220 = vrot.slane %v142, %v219
  %v221 = vlaneseq
  %v222 = vshrl.u32 %v221, 7
  %v223 = vsub.s32 0, %v222
  %v224 = vrot.slane %v156, %v223
  %v225 = vlaneseq
  %v226 = vshrl.u32 %v225, 7
  %v227 = vsub.s32 0, %v226
  %v228 = vrot.slane %v164, %v227
  %v229 = vlaneseq
  %v230 = vshrl.u32 %v229, 7
  %v231 = vsub.s32 0, %v230
  %v232 = vrot.slane %v166, %v231
  %v233 = vlaneseq
  %v234 = vshrl.u32 %v233, 7
  %v235 = vsub.s32 0, %v234
  %v236 = vrot.slane %v149, %v235
  %v237 = vlaneseq
  %v238 = vshrl.u32 %v237, 7
  %v239 = vsub.s32 0, %v238
  %v240 = vrot.slane %v163, %v239
  %v241 = vlaneseq
  %v242 = vshrl.u32 %v241, 7
  %v243 = vsub.s32 0, %v242
  %v244 = vrot.slane %v165, %v243
  %v245 = vlaneseq
  %v246 = vshrl.u32 %v245, 7
  %v247 = vsub.s32 0, %v246
  %v248 = vrot.slane %v167, %v247
  %v249 = vlaneseq
  %v250 = vshrl.u32 %v249, 7
  %v251 = vsub.s32 0, %v250
  %v252 = vrot.slane %v191, %v251
  %v253 = vlaneseq
  %v254 = vshrl.u32 %v253, 7
  %v255 = vsub.s32 0, %v254
  %v256 = vrot.slane %v205, %v255
  %v257 = vlaneseq
  %v258 = vshrl.u32 %v257, 7
  %v259 = vsub.s32 0, %v258
  %v260 = vrot.slane %v213, %v259
  %v261 = vlaneseq
  %v262 = vshrl.u32 %v261, 7
  %v263 = vsub.s32 0, %v262
  %v264 = vrot.slane %v215, %v263
  %v265 = vlaneseq
  %v266 = vshrl.u32 %v265, 7
  %v267 = vsub.s32 0, %v266
  %v268 = vrot.slane %v198, %v267
  %v269 = vlaneseq
  %v270 = vshrl.u32 %v269, 7
  %v271 = vsub.s32 0, %v270
  %v272 = vrot.slane %v212, %v271
  %v273 = vlaneseq
  %v274 = vshrl.u32 %v273, 7
  %v275 = vsub.s32 0, %v274
  %v276 = vrot.slane %v214, %v275
  %v277 = vlaneseq
  %v278 = vshrl.u32 %v277, 7
  %v279 = vsub.s32 0, %v278
  %v280 = vrot.slane %v216, %v279
  %v297 = vsub.f32 %v115, %v220
  %v298 = vsub.f32 %v116, %v220
  %v299 = vsub.f32 %v115, %v224
  %v300 = vsub.f32 %v116, %v224
  %v301 = vsub.f32 %v115, %v228
  %v302 = vsub.f32 %v116, %v228
  %v303 = vsub.f32 %v115, %v232
  %v304 = vsub.f32 %v116, %v232
  %v305 = vsub.f32 %v115, %v236
  %v306 = vsub.f32 %v116, %v236
  %v307 = vsub.f32 %v115, %v240
  %v308 = vsub.f32 %v116, %v240
  %v309 = vsub.f32 %v115, %v244
  %v310 = vsub.f32 %v116, %v244
  %v311 = vsub.f32 %v115, %v248
  %v312 = vsub.f32 %v116, %v248
  %v313 = vsub.f32 %v115, %v252
  %v314 = vsub.f32 %v116, %v252
  %v315 = vsub.f32 %v115, %v256
  %v316 = vsub.f32 %v116, %v256
  %v317 = vsub.f32 %v115, %v260
  %v318 = vsub.f32 %v116, %v260
  %v319 = vsub.f32 %v115, %v264
  %v320 = vsub.f32 %v116, %v264
  %v321 = vsub.f32 %v115, %v268
  %v322 = vsub.f32 %v116, %v268
  %v323 = vsub.f32 %v115, %v272
  %v324 = vsub.f32 %v116, %v272
  %v325 = vsub.f32 %v115, %v276
  %v326 = vsub.f32 %v116, %v276
  %v327 = vsub.f32 %v115, %v280
  %v328 = vsub.f32 %v116, %v280
  %v329 = vmul.f32 %v297, %v297
  %v330 = vmul.f32 %v298, %v298
  %v331 = vmul.f32 %v299, %v299
  %v332 = vmul.f32 %v300, %v300
  %v333 = vmul.f32 %v301, %v301
  %v334 = vmul.f32 %v302, %v302
  %v335 = vmul.f32 %v303, %v303
  %v336 = vmul.f32 %v304, %v304
  %v337 = vmul.f32 %v305, %v305
  %v338 = vmul.f32 %v306, %v306
  %v339 = vmul.f32 %v307, %v307
  %v340 = vmul.f32 %v308, %v308
  %v341 = vmul.f32 %v309, %v309
  %v342 = vmul.f32 %v310, %v310
  %v343 = vmul.f32 %v311, %v311
  %v344 = vmul.f32 %v312, %v312
  %v345 = vmul.f32 %v313, %v313
  %v346 = vmul.f32 %v314, %v314
  %v347 = vmul.f32 %v315, %v315
  %v348 = vmul.f32 %v316, %v316
  %v349 = vmul.f32 %v317, %v317
  %v350 = vmul.f32 %v318, %v318
  %v351 = vmul.f32 %v319, %v319
  %v352 = vmul.f32 %v320, %v320
  %v353 = vmul.f32 %v321, %v321
  %v354 = vmul.f32 %v322, %v322
  %v355 = vmul.f32 %v323, %v323
  %v356 = vmul.f32 %v324, %v324
  %v357 = vmul.f32 %v325, %v325
  %v358 = vmul.f32 %v326, %v326
  %v359 = vmul.f32 %v327, %v327
  %v360 = vmul.f32 %v328, %v328
  %vm361 = vcmask 261120
  %v362 = vsel %vm361, %v329, 0.0
  %363 = vadd.xlane.f32.xlu0 %v362
  %v364 = vpop.xlane.xlu0 %363
  %v365 = vsel %vm361, %v330, 0.0
  %366 = vadd.xlane.f32.xlu0 %v365
  %v367 = vpop.xlane.xlu0 %366
  %v368 = vsel %vm361, %v331, 0.0
  %369 = vadd.xlane.f32.xlu0 %v368
  %v370 = vpop.xlane.xlu0 %369
  %v371 = vsel %vm361, %v332, 0.0
  %372 = vadd.xlane.f32.xlu0 %v371
  %v373 = vpop.xlane.xlu0 %372
  %v374 = vsel %vm361, %v333, 0.0
  %375 = vadd.xlane.f32.xlu0 %v374
  %v376 = vpop.xlane.xlu0 %375
  %v377 = vsel %vm361, %v334, 0.0
  %378 = vadd.xlane.f32.xlu0 %v377
  %v379 = vpop.xlane.xlu0 %378
  %v380 = vsel %vm361, %v335, 0.0
  %381 = vadd.xlane.f32.xlu0 %v380
  %v382 = vpop.xlane.xlu0 %381
  %v383 = vsel %vm361, %v336, 0.0
  %384 = vadd.xlane.f32.xlu0 %v383
  %v385 = vpop.xlane.xlu0 %384
  %v386 = vsel %vm361, %v337, 0.0
  %387 = vadd.xlane.f32.xlu0 %v386
  %v388 = vpop.xlane.xlu0 %387
  %v389 = vsel %vm361, %v338, 0.0
  %390 = vadd.xlane.f32.xlu0 %v389
  %v391 = vpop.xlane.xlu0 %390
  %v392 = vsel %vm361, %v339, 0.0
  %393 = vadd.xlane.f32.xlu0 %v392
  %v394 = vpop.xlane.xlu0 %393
  %v395 = vsel %vm361, %v340, 0.0
  %396 = vadd.xlane.f32.xlu0 %v395
  %v397 = vpop.xlane.xlu0 %396
  %v398 = vsel %vm361, %v341, 0.0
  %399 = vadd.xlane.f32.xlu0 %v398
  %v400 = vpop.xlane.xlu0 %399
  %v401 = vsel %vm361, %v342, 0.0
  %402 = vadd.xlane.f32.xlu0 %v401
  %v403 = vpop.xlane.xlu0 %402
  %v404 = vsel %vm361, %v343, 0.0
  %405 = vadd.xlane.f32.xlu0 %v404
  %v406 = vpop.xlane.xlu0 %405
  %v407 = vsel %vm361, %v344, 0.0
  %408 = vadd.xlane.f32.xlu0 %v407
  %v409 = vpop.xlane.xlu0 %408
  %v410 = vsel %vm361, %v345, 0.0
  %411 = vadd.xlane.f32.xlu0 %v410
  %v412 = vpop.xlane.xlu0 %411
  %v413 = vsel %vm361, %v346, 0.0
  %414 = vadd.xlane.f32.xlu0 %v413
  %v415 = vpop.xlane.xlu0 %414
  %v416 = vsel %vm361, %v347, 0.0
  %417 = vadd.xlane.f32.xlu0 %v416
  %v418 = vpop.xlane.xlu0 %417
  %v419 = vsel %vm361, %v348, 0.0
  %420 = vadd.xlane.f32.xlu0 %v419
  %v421 = vpop.xlane.xlu0 %420
  %v422 = vsel %vm361, %v349, 0.0
  %423 = vadd.xlane.f32.xlu0 %v422
  %v424 = vpop.xlane.xlu0 %423
  %v425 = vsel %vm361, %v350, 0.0
  %426 = vadd.xlane.f32.xlu0 %v425
  %v427 = vpop.xlane.xlu0 %426
  %v428 = vsel %vm361, %v351, 0.0
  %429 = vadd.xlane.f32.xlu0 %v428
  %v430 = vpop.xlane.xlu0 %429
  %v431 = vsel %vm361, %v352, 0.0
  %432 = vadd.xlane.f32.xlu0 %v431
  %v433 = vpop.xlane.xlu0 %432
  %v434 = vsel %vm361, %v353, 0.0
  %435 = vadd.xlane.f32.xlu0 %v434
  %v436 = vpop.xlane.xlu0 %435
  %v437 = vsel %vm361, %v354, 0.0
  %438 = vadd.xlane.f32.xlu0 %v437
  %v439 = vpop.xlane.xlu0 %438
  %v440 = vsel %vm361, %v355, 0.0
  %441 = vadd.xlane.f32.xlu0 %v440
  %v442 = vpop.xlane.xlu0 %441
  %v443 = vsel %vm361, %v356, 0.0
  %444 = vadd.xlane.f32.xlu0 %v443
  %v445 = vpop.xlane.xlu0 %444
  %v446 = vsel %vm361, %v357, 0.0
  %447 = vadd.xlane.f32.xlu0 %v446
  %v448 = vpop.xlane.xlu0 %447
  %v449 = vsel %vm361, %v358, 0.0
  %450 = vadd.xlane.f32.xlu0 %v449
  %v451 = vpop.xlane.xlu0 %450
  %v452 = vsel %vm361, %v359, 0.0
  %453 = vadd.xlane.f32.xlu0 %v452
  %v454 = vpop.xlane.xlu0 %453
  %v455 = vsel %vm361, %v360, 0.0
  %456 = vadd.xlane.f32.xlu0 %v455
  %v457 = vpop.xlane.xlu0 %456
  %v458 = vsub.f32 0.0, %v364
  %v459 = vsub.f32 0.0, %v367
  %v460 = vsub.f32 0.0, %v370
  %v461 = vsub.f32 0.0, %v373
  %v462 = vsub.f32 0.0, %v376
  %v463 = vsub.f32 0.0, %v379
  %v464 = vsub.f32 0.0, %v382
  %v465 = vsub.f32 0.0, %v385
  %v466 = vsub.f32 0.0, %v388
  %v467 = vsub.f32 0.0, %v391
  %v468 = vsub.f32 0.0, %v394
  %v469 = vsub.f32 0.0, %v397
  %v470 = vsub.f32 0.0, %v400
  %v471 = vsub.f32 0.0, %v403
  %v472 = vsub.f32 0.0, %v406
  %v473 = vsub.f32 0.0, %v409
  %v474 = vsub.f32 0.0, %v412
  %v475 = vsub.f32 0.0, %v415
  %v476 = vsub.f32 0.0, %v418
  %v477 = vsub.f32 0.0, %v421
  %v478 = vsub.f32 0.0, %v424
  %v479 = vsub.f32 0.0, %v427
  %v480 = vsub.f32 0.0, %v430
  %v481 = vsub.f32 0.0, %v433
  %v482 = vsub.f32 0.0, %v436
  %v483 = vsub.f32 0.0, %v439
  %v484 = vsub.f32 0.0, %v442
  %v485 = vsub.f32 0.0, %v445
  %v486 = vsub.f32 0.0, %v448
  %v487 = vsub.f32 0.0, %v451
  %v488 = vsub.f32 0.0, %v454
  %v489 = vsub.f32 0.0, %v457
  %v490 = vmul.f32 %v458, 1.442695
  %v491 = vpow.pop %v490
  %v492 = vmul.f32 %v459, 1.442695
  %v493 = vpow.pop %v492
  %v494 = vmul.f32 %v460, 1.442695
  %v495 = vpow.pop %v494
  %v496 = vmul.f32 %v461, 1.442695
  %v497 = vpow.pop %v496
  %v498 = vmul.f32 %v462, 1.442695
  %v499 = vpow.pop %v498
  %v500 = vmul.f32 %v463, 1.442695
  %v501 = vpow.pop %v500
  %v502 = vmul.f32 %v464, 1.442695
  %v503 = vpow.pop %v502
  %v504 = vmul.f32 %v465, 1.442695
  %v505 = vpow.pop %v504
  %v506 = vmul.f32 %v466, 1.442695
  %v507 = vpow.pop %v506
  %v508 = vmul.f32 %v467, 1.442695
  %v509 = vpow.pop %v508
  %v510 = vmul.f32 %v468, 1.442695
  %v511 = vpow.pop %v510
  %v512 = vmul.f32 %v469, 1.442695
  %v513 = vpow.pop %v512
  %v514 = vmul.f32 %v470, 1.442695
  %v515 = vpow.pop %v514
  %v516 = vmul.f32 %v471, 1.442695
  %v517 = vpow.pop %v516
  %v518 = vmul.f32 %v472, 1.442695
  %v519 = vpow.pop %v518
  %v520 = vmul.f32 %v473, 1.442695
  %v521 = vpow.pop %v520
  %v522 = vmul.f32 %v474, 1.442695
  %v523 = vpow.pop %v522
  %v524 = vmul.f32 %v475, 1.442695
  %v525 = vpow.pop %v524
  %v526 = vmul.f32 %v476, 1.442695
  %v527 = vpow.pop %v526
  %v528 = vmul.f32 %v477, 1.442695
  %v529 = vpow.pop %v528
  %v530 = vmul.f32 %v478, 1.442695
  %v531 = vpow.pop %v530
  %v532 = vmul.f32 %v479, 1.442695
  %v533 = vpow.pop %v532
  %v534 = vmul.f32 %v480, 1.442695
  %v535 = vpow.pop %v534
  %v536 = vmul.f32 %v481, 1.442695
  %v537 = vpow.pop %v536
  %v538 = vmul.f32 %v482, 1.442695
  %v539 = vpow.pop %v538
  %v540 = vmul.f32 %v483, 1.442695
  %v541 = vpow.pop %v540
  %v542 = vmul.f32 %v484, 1.442695
  %v543 = vpow.pop %v542
  %v544 = vmul.f32 %v485, 1.442695
  %v545 = vpow.pop %v544
  %v546 = vmul.f32 %v486, 1.442695
  %v547 = vpow.pop %v546
  %v548 = vmul.f32 %v487, 1.442695
  %v549 = vpow.pop %v548
  %v550 = vmul.f32 %v488, 1.442695
  %v551 = vpow.pop %v550
  %v552 = vmul.f32 %v489, 1.442695
  %v553 = vpow.pop %v552
  %v554 = vadd.f32 %v491, 1.0
  %v555 = vadd.f32 %v493, 1.0
  %v556 = vadd.f32 %v495, 1.0
  %v557 = vadd.f32 %v497, 1.0
  %v558 = vadd.f32 %v499, 1.0
  %v559 = vadd.f32 %v501, 1.0
  %v560 = vadd.f32 %v503, 1.0
  %v561 = vadd.f32 %v505, 1.0
  %v562 = vadd.f32 %v507, 1.0
  %v563 = vadd.f32 %v509, 1.0
  %v564 = vadd.f32 %v511, 1.0
  %v565 = vadd.f32 %v513, 1.0
  %v566 = vadd.f32 %v515, 1.0
  %v567 = vadd.f32 %v517, 1.0
  %v568 = vadd.f32 %v519, 1.0
  %v569 = vadd.f32 %v521, 1.0
  %v570 = vadd.f32 %v523, 1.0
  %v571 = vadd.f32 %v525, 1.0
  %v572 = vadd.f32 %v527, 1.0
  %v573 = vadd.f32 %v529, 1.0
  %v574 = vadd.f32 %v531, 1.0
  %v575 = vadd.f32 %v533, 1.0
  %v576 = vadd.f32 %v535, 1.0
  %v577 = vadd.f32 %v537, 1.0
  %v578 = vadd.f32 %v539, 1.0
  %v579 = vadd.f32 %v541, 1.0
  %v580 = vadd.f32 %v543, 1.0
  %v581 = vadd.f32 %v545, 1.0
  %v582 = vadd.f32 %v547, 1.0
  %v583 = vadd.f32 %v549, 1.0
  %v584 = vadd.f32 %v551, 1.0
  %v585 = vadd.f32 %v553, 1.0
  %v586 = vlog2.pop %v554
  %v587 = vmul.f32 %v586, 0.6931472
  %v588 = vlog2.pop %v555
  %v589 = vmul.f32 %v588, 0.6931472
  %v590 = vlog2.pop %v556
  %v591 = vmul.f32 %v590, 0.6931472
  %v592 = vlog2.pop %v557
  %v593 = vmul.f32 %v592, 0.6931472
  %v594 = vlog2.pop %v558
  %v595 = vmul.f32 %v594, 0.6931472
  %v596 = vlog2.pop %v559
  %v597 = vmul.f32 %v596, 0.6931472
  %v598 = vlog2.pop %v560
  %v599 = vmul.f32 %v598, 0.6931472
  %v600 = vlog2.pop %v561
  %v601 = vmul.f32 %v600, 0.6931472
  %v602 = vlog2.pop %v562
  %v603 = vmul.f32 %v602, 0.6931472
  %v604 = vlog2.pop %v563
  %v605 = vmul.f32 %v604, 0.6931472
  %v606 = vlog2.pop %v564
  %v607 = vmul.f32 %v606, 0.6931472
  %v608 = vlog2.pop %v565
  %v609 = vmul.f32 %v608, 0.6931472
  %v610 = vlog2.pop %v566
  %v611 = vmul.f32 %v610, 0.6931472
  %v612 = vlog2.pop %v567
  %v613 = vmul.f32 %v612, 0.6931472
  %v614 = vlog2.pop %v568
  %v615 = vmul.f32 %v614, 0.6931472
  %v616 = vlog2.pop %v569
  %v617 = vmul.f32 %v616, 0.6931472
  %v618 = vlog2.pop %v570
  %v619 = vmul.f32 %v618, 0.6931472
  %v620 = vlog2.pop %v571
  %v621 = vmul.f32 %v620, 0.6931472
  %v622 = vlog2.pop %v572
  %v623 = vmul.f32 %v622, 0.6931472
  %v624 = vlog2.pop %v573
  %v625 = vmul.f32 %v624, 0.6931472
  %v626 = vlog2.pop %v574
  %v627 = vmul.f32 %v626, 0.6931472
  %v628 = vlog2.pop %v575
  %v629 = vmul.f32 %v628, 0.6931472
  %v630 = vlog2.pop %v576
  %v631 = vmul.f32 %v630, 0.6931472
  %v632 = vlog2.pop %v577
  %v633 = vmul.f32 %v632, 0.6931472
  %v634 = vlog2.pop %v578
  %v635 = vmul.f32 %v634, 0.6931472
  %v636 = vlog2.pop %v579
  %v637 = vmul.f32 %v636, 0.6931472
  %v638 = vlog2.pop %v580
  %v639 = vmul.f32 %v638, 0.6931472
  %v640 = vlog2.pop %v581
  %v641 = vmul.f32 %v640, 0.6931472
  %v642 = vlog2.pop %v582
  %v643 = vmul.f32 %v642, 0.6931472
  %v644 = vlog2.pop %v583
  %v645 = vmul.f32 %v644, 0.6931472
  %v646 = vlog2.pop %v584
  %v647 = vmul.f32 %v646, 0.6931472
  %v648 = vlog2.pop %v585
  %v649 = vmul.f32 %v648, 0.6931472
  %v650 = vadd.f32 %v364, %v587
  %v651 = vadd.f32 %v367, %v589
  %v652 = vadd.f32 %v370, %v591
  %v653 = vadd.f32 %v373, %v593
  %v654 = vadd.f32 %v376, %v595
  %v655 = vadd.f32 %v379, %v597
  %v656 = vadd.f32 %v382, %v599
  %v657 = vadd.f32 %v385, %v601
  %v658 = vadd.f32 %v388, %v603
  %v659 = vadd.f32 %v391, %v605
  %v660 = vadd.f32 %v394, %v607
  %v661 = vadd.f32 %v397, %v609
  %v662 = vadd.f32 %v400, %v611
  %v663 = vadd.f32 %v403, %v613
  %v664 = vadd.f32 %v406, %v615
  %v665 = vadd.f32 %v409, %v617
  %v666 = vadd.f32 %v412, %v619
  %v667 = vadd.f32 %v415, %v621
  %v668 = vadd.f32 %v418, %v623
  %v669 = vadd.f32 %v421, %v625
  %v670 = vadd.f32 %v424, %v627
  %v671 = vadd.f32 %v427, %v629
  %v672 = vadd.f32 %v430, %v631
  %v673 = vadd.f32 %v433, %v633
  %v674 = vadd.f32 %v436, %v635
  %v675 = vadd.f32 %v439, %v637
  %v676 = vadd.f32 %v442, %v639
  %v677 = vadd.f32 %v445, %v641
  %v678 = vadd.f32 %v448, %v643
  %v679 = vadd.f32 %v451, %v645
  %v680 = vadd.f32 %v454, %v647
  %v681 = vadd.f32 %v457, %v649
  %v682 = vlaneseq
  %v683 = vshrl.u32 %v682, 7
  %v684 = vadd.s32 %v683, 8
  %v685 = vlaneseq
  %v686 = vand.u32 %v685, 127
  %vm687 = vcmp.eq.s32.totalorder %v683, %v686
  %vm688 = vcmp.eq.s32.totalorder %v684, %v686
  %v721 = vlaneseq
  %v722 = vshrl.u32 %v721, 7
  %v723 = vsub.s32 %v686, %v722
  %v724 = vrot.slane %v650, %v723
  %v725 = vadd.s32 %v686, 4294967288
  %v726 = vlaneseq
  %v727 = vshrl.u32 %v726, 7
  %v728 = vsub.s32 %v725, %v727
  %v729 = vrot.slane %v651, %v728
  %vm730 = vcmask 130112
  %v731 = vsel %vm730, %v729, %v724
  %v732 = vlaneseq
  %v733 = vshrl.u32 %v732, 7
  %v734 = vsub.s32 %v686, %v733
  %v735 = vrot.slane %v652, %v734
  %v736 = vlaneseq
  %v737 = vshrl.u32 %v736, 7
  %v738 = vsub.s32 %v725, %v737
  %v739 = vrot.slane %v653, %v738
  %v740 = vsel %vm730, %v739, %v735
  %v741 = vlaneseq
  %v742 = vshrl.u32 %v741, 7
  %v743 = vsub.s32 %v686, %v742
  %v744 = vrot.slane %v654, %v743
  %v745 = vlaneseq
  %v746 = vshrl.u32 %v745, 7
  %v747 = vsub.s32 %v725, %v746
  %v748 = vrot.slane %v655, %v747
  %v749 = vsel %vm730, %v748, %v744
  %v750 = vlaneseq
  %v751 = vshrl.u32 %v750, 7
  %v752 = vsub.s32 %v686, %v751
  %v753 = vrot.slane %v656, %v752
  %v754 = vlaneseq
  %v755 = vshrl.u32 %v754, 7
  %v756 = vsub.s32 %v725, %v755
  %v757 = vrot.slane %v657, %v756
  %v758 = vsel %vm730, %v757, %v753
  %v759 = vlaneseq
  %v760 = vshrl.u32 %v759, 7
  %v761 = vsub.s32 %v686, %v760
  %v762 = vrot.slane %v658, %v761
  %v763 = vlaneseq
  %v764 = vshrl.u32 %v763, 7
  %v765 = vsub.s32 %v725, %v764
  %v766 = vrot.slane %v659, %v765
  %v767 = vsel %vm730, %v766, %v762
  %v768 = vlaneseq
  %v769 = vshrl.u32 %v768, 7
  %v770 = vsub.s32 %v686, %v769
  %v771 = vrot.slane %v660, %v770
  %v772 = vlaneseq
  %v773 = vshrl.u32 %v772, 7
  %v774 = vsub.s32 %v725, %v773
  %v775 = vrot.slane %v661, %v774
  %v776 = vsel %vm730, %v775, %v771
  %v777 = vlaneseq
  %v778 = vshrl.u32 %v777, 7
  %v779 = vsub.s32 %v686, %v778
  %v780 = vrot.slane %v662, %v779
  %v781 = vlaneseq
  %v782 = vshrl.u32 %v781, 7
  %v783 = vsub.s32 %v725, %v782
  %v784 = vrot.slane %v663, %v783
  %v785 = vsel %vm730, %v784, %v780
  %v786 = vlaneseq
  %v787 = vshrl.u32 %v786, 7
  %v788 = vsub.s32 %v686, %v787
  %v789 = vrot.slane %v664, %v788
  %v790 = vlaneseq
  %v791 = vshrl.u32 %v790, 7
  %v792 = vsub.s32 %v725, %v791
  %v793 = vrot.slane %v665, %v792
  %v794 = vsel %vm730, %v793, %v789
  %v795 = vlaneseq
  %v796 = vshrl.u32 %v795, 7
  %v797 = vsub.s32 %v686, %v796
  %v798 = vrot.slane %v666, %v797
  %v799 = vlaneseq
  %v800 = vshrl.u32 %v799, 7
  %v801 = vsub.s32 %v725, %v800
  %v802 = vrot.slane %v667, %v801
  %v803 = vsel %vm730, %v802, %v798
  %v804 = vlaneseq
  %v805 = vshrl.u32 %v804, 7
  %v806 = vsub.s32 %v686, %v805
  %v807 = vrot.slane %v668, %v806
  %v808 = vlaneseq
  %v809 = vshrl.u32 %v808, 7
  %v810 = vsub.s32 %v725, %v809
  %v811 = vrot.slane %v669, %v810
  %v812 = vsel %vm730, %v811, %v807
  %v813 = vlaneseq
  %v814 = vshrl.u32 %v813, 7
  %v815 = vsub.s32 %v686, %v814
  %v816 = vrot.slane %v670, %v815
  %v817 = vlaneseq
  %v818 = vshrl.u32 %v817, 7
  %v819 = vsub.s32 %v725, %v818
  %v820 = vrot.slane %v671, %v819
  %v821 = vsel %vm730, %v820, %v816
  %v822 = vlaneseq
  %v823 = vshrl.u32 %v822, 7
  %v824 = vsub.s32 %v686, %v823
  %v825 = vrot.slane %v672, %v824
  %v826 = vlaneseq
  %v827 = vshrl.u32 %v826, 7
  %v828 = vsub.s32 %v725, %v827
  %v829 = vrot.slane %v673, %v828
  %v830 = vsel %vm730, %v829, %v825
  %v831 = vlaneseq
  %v832 = vshrl.u32 %v831, 7
  %v833 = vsub.s32 %v686, %v832
  %v834 = vrot.slane %v674, %v833
  %v835 = vlaneseq
  %v836 = vshrl.u32 %v835, 7
  %v837 = vsub.s32 %v725, %v836
  %v838 = vrot.slane %v675, %v837
  %v839 = vsel %vm730, %v838, %v834
  %v840 = vlaneseq
  %v841 = vshrl.u32 %v840, 7
  %v842 = vsub.s32 %v686, %v841
  %v843 = vrot.slane %v676, %v842
  %v844 = vlaneseq
  %v845 = vshrl.u32 %v844, 7
  %v846 = vsub.s32 %v725, %v845
  %v847 = vrot.slane %v677, %v846
  %v848 = vsel %vm730, %v847, %v843
  %v849 = vlaneseq
  %v850 = vshrl.u32 %v849, 7
  %v851 = vsub.s32 %v686, %v850
  %v852 = vrot.slane %v678, %v851
  %v853 = vlaneseq
  %v854 = vshrl.u32 %v853, 7
  %v855 = vsub.s32 %v725, %v854
  %v856 = vrot.slane %v679, %v855
  %v857 = vsel %vm730, %v856, %v852
  %v858 = vlaneseq
  %v859 = vshrl.u32 %v858, 7
  %v860 = vsub.s32 %v686, %v859
  %v861 = vrot.slane %v680, %v860
  %v862 = vlaneseq
  %v863 = vshrl.u32 %v862, 7
  %v864 = vsub.s32 %v725, %v863
  %v865 = vrot.slane %v681, %v864
  %v866 = vsel %vm730, %v865, %v861
  %vm867 = vcmask 1041409
  %v868 = vsel %vm867, %v740, %v731
  %vm869 = vcmask 1042434
  %v870 = vsel %vm869, %v749, %v868
  %vm871 = vcmask 1043459
  %v872 = vsel %vm871, %v758, %v870
  %vm873 = vcmask 1044484
  %v874 = vsel %vm873, %v767, %v872
  %vm875 = vcmask 1045509
  %v876 = vsel %vm875, %v776, %v874
  %vm877 = vcmask 1046534
  %v878 = vsel %vm877, %v785, %v876
  %vm879 = vcmask 1047559
  %v880 = vsel %vm879, %v794, %v878
  %v881 = vsel %vm867, %v812, %v803
  %v882 = vsel %vm869, %v821, %v881
  %v883 = vsel %vm871, %v830, %v882
  %v884 = vsel %vm873, %v839, %v883
  %v885 = vsel %vm875, %v848, %v884
  %v886 = vsel %vm877, %v857, %v885
  %v887 = vsel %vm879, %v866, %v886
  %v890 = vsel %vm687, 1.0, %v880
  %v891 = vsel %vm688, 1.0, %v887
  %v892 = vld [vmem:[%s3] sm:$0xff]
  %v893 = vld [vmem:[%s3 + $0x8] sm:$0xff]
  %v894 = vld [vmem:[%s1] sm:$0xff]
  %v895 = vld [vmem:[%s1 + $0x8] sm:$0xff]
  %v896 = vld [vmem:[%s2] sm:$0x1]
  %898 = vset.pattern.permute.xlu0 0
  %899 = vperm.xlu0 %898, %v894
  %v900 = vpop.permute.xlu0 %899
  %903 = vset.pattern.permute.xlu0 0
  %904 = vperm.xlu0 %903, %v895
  %v905 = vpop.permute.xlu0 %904
  %v908 = vlaneseq
  %v909 = vshrl.u32 %v908, 7
  %v910 = vsub.s32 0, %v909
  %v911 = vrot.slane %v896, %v910
  %v913 = vmul.f32 %v900, %v911
  %v914 = vmul.f32 %v905, %v911
  %v915 = vmul.f32 %v892, %v913
  %v916 = vmul.f32 %v893, %v914
  %v917 = vrcp.pop %v890
  %v918 = vmul.f32 1.0, %v917
  %v919 = vrcp.pop %v891
  %v920 = vmul.f32 1.0, %v919
  %v921 = vmul.f32 %v918, %v918
  %v922 = vmul.f32 %v920, %v920
  %v923 = vsub.f32 %v921, %v918
  %v924 = vsub.f32 %v922, %v920
  %v925 = vmul.f32 %v915, %v923
  %v926 = vmul.f32 %v916, %v924
  %vm927 = vcmp.ne.f32.partialorder %v925, %v925
  %vm928 = vcmp.ne.f32.partialorder %v926, %v926
  %v929 = vsel %vm927, 0.0, %v925
  %v930 = vsel %vm928, 0.0, %v926
  %vm931 = vcmask 130048
  %v932 = vsel %vm931, %v929, 0.0
  %933 = vadd.xlane.f32.xlu0 %v932
  %v934 = vpop.xlane.xlu0 %933
  %v935 = vsel %vm931, %v930, 0.0
  %936 = vadd.xlane.f32.xlu0 %v935
  %v937 = vpop.xlane.xlu0 %936
  %vm938 = vcmask 7168
  %939 = vst.msk [vmem:[%s6] sm:$0xff] %vm938, %v934
  %940 = vst.msk [vmem:[%s6 + $0x8] sm:$0xff] %vm938, %v937
  // Predicated region
  $region26: #{potential_energy.1} parent=0 // pred_check
    _
  $region27: #{potential_energy.1} parent=0 // pred_check_branch
    %942 = sbr.rel (0) target = $region29
  $region28: #{potential_energy.1} parent=0 // pred_region
    _
  $region29: #{potential_energy.1} parent=0 // pred_fallthru
    _
  // Predicated region
  $region30: #{potential_energy.1} parent=0 // pred_check
    _
  $region31: #{potential_energy.1} parent=0 // pred_check_branch
    %944 = sbr.rel (0) target = $region33
  $region32: #{potential_energy.1} parent=0 // pred_region
    _
  $region33: #{potential_energy.1} parent=0 // pred_fallthru
    _

</llo_original>
